<compile_context>
chip_gen: v7x
topology: tpu7x:2x2x1
jax: 0.10.0
libtpu: 0.0.40
codegen_flags: <defaults>
</compile_context>

<pallas_src>
import functools

import numpy as np
import jax
import jax.numpy as jnp
from jax.experimental import pallas as pl
from jax.experimental.pallas import tpu as pltpu


# --------------------------------------------------------------------------
# Synthetic neighbor table.
# TODO(synk): get_neighbor_tensor() is not provided in the prompt; synthesize a
# deterministic "even-r" offset hexagonal grid with up to 6 neighbors and -1
# for out-of-bounds, matching the buffer contract (num_hex, max_neighbors).
# --------------------------------------------------------------------------
def make_hex_neighbors(rows, cols):
    nbrs = np.full((rows * cols, 6), -1, dtype=np.int32)

    def idx(r, c):
        return r * cols + c

    for r in range(rows):
        for c in range(cols):
            if r % 2 == 0:
                offs = [(0, -1), (0, 1), (-1, -1), (-1, 0), (1, -1), (1, 0)]
            else:
                offs = [(0, -1), (0, 1), (-1, 0), (-1, 1), (1, 0), (1, 1)]
            for k, (dr, dc) in enumerate(offs):
                rr, cc = r + dr, c + dc
                if 0 <= rr < rows and 0 <= cc < cols:
                    nbrs[idx(r, c), k] = idx(rr, cc)
    return jnp.asarray(nbrs)


# --------------------------------------------------------------------------
# Small helpers
# --------------------------------------------------------------------------
def _round_up(v, m):
    return (v + m - 1) // m * m


def _device_kind():
    try:
        return jax.devices()[0].device_kind.lower()
    except Exception:
        return ""


def _vmem_limit_bytes(kind):
    # v7x: 64 MiB VMEM per TensorCore -> cap well below; v5e/v6e: 128 MiB.
    if "v7" in kind or "7x" in kind:
        return 48 * 1024 * 1024
    if "v5" in kind or "v6" in kind:
        return 96 * 1024 * 1024
    return None


def _const_spec(shape):
    """BlockSpec for a grid-invariant input; single-buffered when supported."""
    nd = len(shape)
    index_map = lambda i, _nd=nd: (0,) * _nd
    try:
        return pl.BlockSpec(shape, index_map, pipeline_mode=pl.Buffered(1))
    except Exception:
        return pl.BlockSpec(shape, index_map)


def _choose_batch_block(B, C, H, O, scratch_rows, x_itemsize, out_itemsize):
    """Largest batch tile bt (divisor of B) under a per-step VMEM budget,
    keeping >= 2 grid steps when B >= 2 so both v7x TensorCores get work."""
    per_b = (2 * C * H * x_itemsize          # x tile, double-buffered
             + 2 * O * H * out_itemsize      # out tile, double-buffered
             + scratch_rows * H * 2)         # bf16 value scratch
    budget = 8 << 20
    best = 1
    for d in range(1, B + 1):
        if B % d:
            continue
        if d * per_b > budget:
            break
        if B >= 2 and B // d < 2:
            continue
        best = d
    return best


# --------------------------------------------------------------------------
# One-time calibration of pltpu.roll's direction convention (matches jnp.roll;
# a tiny one-tile probe makes the wrapper robust either way).
# --------------------------------------------------------------------------
@functools.lru_cache(maxsize=1)
def _roll_sign():
    def probe(x_ref, o_ref):
        o_ref[...] = pltpu.roll(x_ref[...], 1, axis=1)

    x = jnp.tile(jnp.arange(128, dtype=jnp.float32)[None, :], (8, 1))
    y = pl.pallas_call(
        probe, out_shape=jax.ShapeDtypeStruct((8, 128), jnp.float32))(x)
    # jnp.roll convention: element 0 moves to index 1 -> y[0, 1] == 0, in which
    # case fetching x[h + d] needs shift = (-d) % H, i.e. sign -1.
    return -1 if float(jax.device_get(y)[0, 1]) == 0.0 else 1


# --------------------------------------------------------------------------
# Pallas kernel: one batch tile (bt, C, H) per grid step.
# --------------------------------------------------------------------------
def _magic_conv_kernel(x_ref, m_ref, ic_ref, w_ref, b_ref, o_ref, v_ref, *,
                       pair_shifts, pair_taps, num_taps, groups, cg, og,
                       rg_pad, roll_sign, ew_dtype):
    # x_ref : (bt, C, H)         input tile (streamed)
    # m_ref : (P + K, H)         rows [0:P] per-(tap, lane-offset) valid masks
    #                            rows [P:P+K] per-tap invalid masks   (ew dtype)
    # ic_ref: (1, H)             1 / (1 + valid_count), kept in f32
    # w_ref : (G, Og, Rg_pad)    fused per-group weights, tap-major (bf16)
    # b_ref : (O, 1)             bias (f32)
    # o_ref : (bt, O, H)         output tile
    # v_ref : (bt, G*Rg_pad, H)  bf16 value scratch feeding the MXU
    bt, C, H = x_ref.shape
    K = num_taps
    T = K + 1
    P = len(pair_shifts)
    rg = T * cg

    # Zero the few padding rows of the scratch so they contribute exactly zero
    # to the contraction. Done unconditionally (cheap) so it is also correct
    # when the "parallel" grid is sharded across TensorCores (a core may never
    # execute program_id == 0).
    if rg_pad > rg:
        for g in range(groups):
            r0 = g * rg_pad + rg
            v_ref[:, r0:g * rg_pad + rg_pad, :] = jnp.zeros(
                (bt, rg_pad - rg, H), v_ref.dtype)

    for b in range(bt):
        xb = x_ref[b].astype(ew_dtype)                     # (C, H)

        def store_tap(t, slab, _b=b):
            sb = slab.astype(v_ref.dtype)
            for g in range(groups):
                r0 = g * rg_pad + t * cg
                blk = sb if groups == 1 else sb[g * cg:(g + 1) * cg, :]
                v_ref[_b, r0:r0 + cg, :] = blk

        # center tap
        store_tap(0, xb)

        # Neighbor "gather": each tap decomposes into a few static lane
        # rotations (XLU slot) gated by precomputed masks (VPU). Slabs are
        # written to the scratch as soon as they are produced (no concat, no
        # long vreg live ranges); valid_sum is the only carried accumulator.
        rolled_cache = {}

        def rolled(shift, _xb=xb):
            if shift not in rolled_cache:
                rolled_cache[shift] = (
                    _xb if shift == 0 else pltpu.roll(_xb, shift, axis=1))
            return rolled_cache[shift]

        valid_sum = None
        for k in range(K):
            nv_k = None
            for j in range(P):
                if pair_taps[j] != k:
                    continue
                shift = (roll_sign * pair_shifts[j]) % H
                contrib = m_ref[j:j + 1, :] * rolled(shift)
                nv_k = contrib if nv_k is None else nv_k + contrib
            if nv_k is None:
                nv_k = jnp.zeros_like(xb)
            store_tap(k + 1, nv_k)                         # unfilled neighbors
            valid_sum = nv_k if valid_sum is None else valid_sum + nv_k

        # avg over {center + valid neighbors}; 1/(1+count) stays f32 (exact).
        avg = ((xb + valid_sum) * ic_ref[0:1, :]).astype(ew_dtype)   # (C, H)

        # Fill invalid neighbor slots with avg (read-modify-write on the
        # scratch rows; stored nv_k is exactly 0 at invalid positions).
        for k in range(K):
            fill = (m_ref[P + k:P + k + 1, :] * avg).astype(v_ref.dtype)
            for g in range(groups):
                r0 = g * rg_pad + (k + 1) * cg
                blk = fill if groups == 1 else fill[g * cg:(g + 1) * cg, :]
                v_ref[b, r0:r0 + cg, :] = v_ref[b, r0:r0 + cg, :] + blk

        # Fused all-taps contraction per group on the MXU (bf16 in, f32 acc).
        # For small O the MXU is mostly idle by construction; the VPU path
        # above is the binding unit (accepted per review).
        for g in range(groups):
            vg = v_ref[b, g * rg_pad:(g + 1) * rg_pad, :]            # (Rg_pad, H)
            acc = jnp.dot(w_ref[g], vg, preferred_element_type=jnp.float32)
            acc = acc + b_ref[g * og:(g + 1) * og, :]
            o_ref[b, g * og:(g + 1) * og, :] = acc.astype(o_ref.dtype)


# --------------------------------------------------------------------------
# Wrapper
# --------------------------------------------------------------------------
def magic_conv_pallas(x, neighbors, weight, bias=None, groups=1):
    # NOTE: `neighbors` is a module buffer and must be concrete here; the
    # wrapper analyses it with numpy to build static roll offsets and masks.
    B, C, H = x.shape
    O, Cg, T = weight.shape
    K = T - 1
    assert C % groups == 0 and O % groups == 0 and Cg == C // groups
    Og = O // groups

    kind = _device_kind()
    # v5e VPU has no native bf16 -> keep elementwise math f32 there; v6e/v7x
    # run the mask/avg path in bf16 (half the VALU passes / vreg pressure).
    ew_dtype = jnp.float32 if "v5" in kind else jnp.bfloat16

    # ---- decompose the neighbor table: tap k -> a few static lane offsets.
    nb = np.asarray(jax.device_get(neighbors)).astype(np.int64)       # (H, K)
    assert nb.shape == (H, K)
    valid = nb >= 0
    offs = nb - np.arange(H)[:, None]
    pair_shifts, pair_taps, pair_masks = [], [], []
    for k in range(K):
        vk = valid[:, k]
        if vk.any():
            for d in np.unique(offs[vk, k]):
                pair_shifts.append(int(d))
                pair_taps.append(k)
                pair_masks.append((vk & (offs[:, k] == d)).astype(np.float32))
    P = len(pair_shifts)
    # TODO(synk): a fully unstructured neighbor table (up to H*K distinct
    # offsets) would need a gather/DMA path instead of static lane rolls.

    invalid = (~valid).T.astype(np.float32)                           # (K, H)
    mask_rows = np.concatenate(
        [np.stack(pair_masks, 0) if P else np.zeros((0, H), np.float32),
         invalid], axis=0)                                            # (P+K, H)
    masks = jnp.asarray(mask_rows).astype(ew_dtype)
    inv_count = jnp.asarray(
        (1.0 / (1.0 + valid.sum(1))).astype(np.float32)[None, :])     # (1,H) f32

    # ---- fused per-group weights: tap-major channel blocks, zero pad rows.
    # TODO(synk): odd C//groups with the bf16 scratch relies on Mosaic's
    # masked packed sub-tile stores (tap row offsets not 2-aligned).
    Rg = T * Cg
    Rg_pad = _round_up(Rg, 16)               # bf16 sublane-packing granule
    w4 = weight.reshape(groups, Og, Cg, T).transpose(0, 1, 3, 2)      # (G,Og,T,Cg)
    w_fused = w4.reshape(groups, Og, Rg).astype(jnp.float32)
    if Rg_pad > Rg:
        w_fused = jnp.pad(w_fused, ((0, 0), (0, 0), (0, Rg_pad - Rg)))
    w_fused = w_fused.astype(jnp.bfloat16)

    b_arr = bias if bias is not None else jnp.zeros((O,), jnp.float32)
    b2 = b_arr.astype(jnp.float32).reshape(O, 1)

    # ---- batch tiling / grid.
    bt = _choose_batch_block(B, C, H, O, groups * Rg_pad,
                             x.dtype.itemsize, x.dtype.itemsize)
    n_steps = B // bt

    kernel = functools.partial(
        _magic_conv_kernel,
        pair_shifts=tuple(pair_shifts), pair_taps=tuple(pair_taps),
        num_taps=K, groups=groups, cg=Cg, og=Og, rg_pad=Rg_pad,
        roll_sign=_roll_sign(), ew_dtype=ew_dtype)

    cp_kwargs = dict(dimension_semantics=("parallel",))
    vmem_limit = _vmem_limit_bytes(kind)
    if vmem_limit is not None:
        cp_kwargs["vmem_limit_bytes"] = vmem_limit

    out = pl.pallas_call(
        kernel,
        out_shape=jax.ShapeDtypeStruct((B, O, H), x.dtype),
        grid_spec=pltpu.PrefetchScalarGridSpec(
            num_scalar_prefetch=0,
            grid=(n_steps,),
            in_specs=[
                pl.BlockSpec((bt, C, H), lambda i: (i, 0, 0)),   # x (streamed)
                _const_spec((P + K, H)),                         # masks
                _const_spec((1, H)),                             # 1/(1+count)
                _const_spec((groups, Og, Rg_pad)),               # fused weights
                _const_spec((O, 1)),                             # bias
            ],
            out_specs=pl.BlockSpec((bt, O, H), lambda i: (i, 0, 0)),
            scratch_shapes=[
                pltpu.VMEM((bt, groups * Rg_pad, H), jnp.bfloat16)],
        ),
        compiler_params=pltpu.CompilerParams(**cp_kwargs),
    )(x, masks, inv_count, w_fused, b2)
    return out


# --------------------------------------------------------------------------
# Pure-JAX reference (mirrors the PyTorch forward exactly, f32 / HIGHEST)
# --------------------------------------------------------------------------
def magic_conv_ref(x, neighbors, weight, bias=None, groups=1):
    B, C, H = x.shape
    O, Cg, T = weight.shape
    valid_mask = neighbors >= 0
    idx = jnp.clip(neighbors, 0, None)
    center = x[:, :, :, None]                                  # (B, C, H, 1)
    nv = x[:, :, idx]                                          # (B, C, H, K)
    em = valid_mask[None, None, :, :]                          # (1, 1, H, K)
    valid_sum = jnp.sum(nv * em.astype(nv.dtype), axis=3, keepdims=True)
    total = valid_sum + center
    count = jnp.sum(em, axis=3, keepdims=True).astype(jnp.float32) + 1.0
    avg = total / count
    nv = jnp.where(em, nv, jnp.broadcast_to(avg, nv.shape))
    allv = jnp.concatenate([center, nv], axis=3)               # (B, C, H, T)
    allv = allv.reshape(B, groups, C // groups, H, T)
    w = weight.reshape(groups, O // groups, Cg, T)
    out = jnp.einsum('bgihk,goik->bgoh', allv, w,
                     precision=jax.lax.Precision.HIGHEST)
    out = out.reshape(B, O, H)
    if bias is not None:
        out = out + bias[None, :, None]
    return out


if __name__ == "__main__":
    B, C_in, C_out = 2, 4, 8
    rows, cols = 8, 16
    H = rows * cols                      # num_hex = 128
    neighbors = make_hex_neighbors(rows, cols)   # (H, 6), -1 = invalid
    K = neighbors.shape[1]
    T = K + 1                                    # total_inputs

    key = jax.random.PRNGKey(0)
    k_x, k_w, k_w2, k_b2 = jax.random.split(key, 4)
    x = jax.random.normal(k_x, (B, C_in, H), jnp.float32)

    # ---- test 1: groups=1, reset_parameters()-style init (zero bias) -------
    fan_in = C_in * T
    bound = (2.0 ** 0.5) * (3.0 / fan_in) ** 0.5
    weight = jax.random.uniform(k_w, (C_out, C_in, T), jnp.float32,
                                minval=-bound, maxval=bound)
    bias = jnp.zeros((C_out,), jnp.float32)

    out = magic_conv_pallas(x, neighbors, weight, bias, groups=1)
    out = jax.block_until_ready(out)
    ref = magic_conv_ref(x, neighbors, weight, bias, groups=1)
    assert out.shape == (B, C_out, H), out.shape
    # bf16 MXU contraction (f32 accumulation) vs f32/HIGHEST reference;
    # structural bugs would produce O(1) errors, far above this threshold.
    err = float(jnp.max(jnp.abs(out - ref)))
    assert jnp.allclose(out, ref, atol=5e-2, rtol=5e-2), err

    # ---- test 2: groups=2 with a nonzero bias (per-group contraction path) -
    groups2 = 2
    w2 = jax.random.uniform(k_w2, (C_out, C_in // groups2, T), jnp.float32,
                            minval=-0.5, maxval=0.5)
    b2 = jax.random.normal(k_b2, (C_out,), jnp.float32) * 0.1
    out2 = magic_conv_pallas(x, neighbors, w2, b2, groups=groups2)
    out2 = jax.block_until_ready(out2)
    ref2 = magic_conv_ref(x, neighbors, w2, b2, groups=groups2)
    err2 = float(jnp.max(jnp.abs(out2 - ref2)))
    assert jnp.allclose(out2, ref2, atol=5e-2, rtol=5e-2), err2

    print("KERNEL_OK")
</pallas_src>

<mosaic_0001>
module attributes {stable_mosaic.version = 11 : i64} {
  func.func @probe(%arg0: memref<8x128xf32, #tpu.memory_space<vmem>>, %arg1: memref<8x128xf32, #tpu.memory_space<vmem>>) attributes {dimension_semantics = [], scalar_prefetch = 0 : i64, scratch_operands = 0 : i64, tpu.core_type = #tpu.core_type<tc>} {
    %c0 = arith.constant 0 : index
    %c0_0 = arith.constant 0 : index
    %0 = vector.load %arg0[%c0, %c0_0] : memref<8x128xf32, #tpu.memory_space<vmem>>, vector<8x128xf32>
    %c1_i32 = arith.constant 1 : i32
    %1 = tpu.dynamic_rotate %0 by %c1_i32 dim 1 : vector<8x128xf32>, i32 -> vector<8x128xf32>
    %c0_1 = arith.constant 0 : index
    %c0_2 = arith.constant 0 : index
    %2 = vector.load %arg1[%c0_1, %c0_2] : memref<8x128xf32, #tpu.memory_space<vmem>>, vector<8x128xf32>
    tpu.vector_store %arg1[%c0_1, %c0_2], %1 {strides = array<i32>} : memref<8x128xf32, #tpu.memory_space<vmem>>, vector<8x128xf32>,
    return
  }
}

</mosaic_0001>

<llo_original>
// kernel: tpu_custom_call.1
$region0: #{tpu_custom_call.1}
  #allocation0 [shape = 'u32[]', space=smem, size = 0x4, offset = 0x4, fixed_abs, tag = 'smem constant byte address 0x4 - core index']
  #allocation1 [shape = 'u32[144,128]{1,0:T(1,128)}', space=vmem, size = 0x12000, scoped, tag = 'internal scratch']
  %s0 = inlined_call_operand.hbm [shape: f32[8,128], index: 0, kind: input, shape index: {}]
  %s1 = inlined_call_operand.hbm [shape: f32[8,128], index: 1, kind: output, shape index: {}]
  %s2 = sld [smem:[#allocation0]]
  $region18: #{tpu_custom_call.1} parent=0
    _
  %s4 = ssub.s32 1, %s2
  %s5 = scalar_select 0, %s4, %s2
  $region1: #{tpu_custom_call.1} parent=0
    #allocation2 [shape = 'u8[4096]{0}', space=vmem, size = 0x1000, scoped, tag = 'input window, operand 0, single buffered']
    #allocation3 [shape = 's32[1]{0}', space=sflag, size = 0x4, scoped, tag = 'scoped memory for tpu_custom_call.1']
    #allocation4 [shape = 's32[1]{0}', space=sflag, size = 0x4, scoped, tag = 'scoped memory for tpu_custom_call.1']
    #allocation5 [shape = 'u8[4096]{0}', space=vmem, size = 0x1000, scoped, tag = 'output window, operand 0, single buffered']
    %6 = vsyncpa [#allocation3], 0
    %7 = vsyncpa [#allocation4], 0
    // Predicated region
    $region2: #{tpu_custom_call.1} parent=1 // pred_check
      _
    $region3: #{tpu_custom_call.1} parent=1 // pred_check_branch
      %9 = sbr.rel (0) target = $region5
    $region4: #{tpu_custom_call.1} parent=1 // pred_region
      %s11 = ssub.s32 128, 128
      %12 = vsyncadd [#allocation3], %s11
      %s14 = sshll.u32 [#allocation2], 4
      %s15 = int_to_ptr.vmem [resolvable:$true] %s14
      %17 = dma.hbm_to_vmem [thread:$0]  %s0, 128, %s15, [#allocation3]
    $region5: #{tpu_custom_call.1} parent=1 // pred_fallthru
      _
    // Predicated region
    $region6: #{tpu_custom_call.1} parent=1 // pred_check
      _
    $region7: #{tpu_custom_call.1} parent=1 // pred_check_branch
      %19 = sbr.rel (0) target = $region9
    $region8: #{tpu_custom_call.1} parent=1 // pred_region
      %20 = dma.done [#allocation3], 128
    $region9: #{tpu_custom_call.1} parent=1 // pred_fallthru
      _
    %v21 = vld [vmem:[#allocation2] sm:$0xff]
    %22 = vrot.lane.b32.xlu0 %v21, 1
    %v23 = vpop.permute.xlu0 %22
    %24 = vst [vmem:[#allocation5] sm:$0xff] %v23
    // Predicated region
    $region10: #{tpu_custom_call.1} parent=1 // pred_check
      _
    $region11: #{tpu_custom_call.1} parent=1 // pred_check_branch
      %26 = sbr.rel (0) target = $region13
    $region12: #{tpu_custom_call.1} parent=1 // pred_region
      %s28 = ssub.s32 128, 128
      %29 = vsyncadd [#allocation4], %s28
      %s31 = sshll.u32 [#allocation5], 4
      %s32 = int_to_ptr.vmem [resolvable:$true] %s31
      %34 = dma.vmem_to_hbm [thread:$0]  %s32, 128, %s1, [#allocation4]
    $region13: #{tpu_custom_call.1} parent=1 // pred_fallthru
      _
    // Predicated region
    $region14: #{tpu_custom_call.1} parent=1 // pred_check
      _
    $region15: #{tpu_custom_call.1} parent=1 // pred_check_branch
      %36 = sbr.rel (0) target = $region17
    $region16: #{tpu_custom_call.1} parent=1 // pred_region
      %37 = dma.done [#allocation4], 128
    $region17: #{tpu_custom_call.1} parent=1 // pred_fallthru
      _
    %38 = vsyncpa [#allocation3], 1
    %39 = vsyncpa [#allocation4], 1

</llo_original>
